<compile_context>
chip_gen: v6e
topology: v6e:2x2x1
jax: 0.10.0
libtpu: 0.0.40
codegen_flags: <defaults>
</compile_context>

<pallas_src>
import functools

import jax
import jax.numpy as jnp
from jax import lax
from jax.experimental import pallas as pl
from jax.experimental.pallas import tpu as pltpu


def _round_up(x, m):
    return ((x + m - 1) // m) * m


def _vmem_sizes():
    """(tile budget bytes, vmem_limit_bytes) chosen per TPU generation."""
    try:
        info = pltpu.get_tpu_info()
        vmem = int(getattr(info, "vmem_capacity_bytes", 0)
                   or getattr(info, "vmem_size_bytes", 0) or 0)
    except Exception:
        vmem = 0
    if vmem >= 96 * 1024 * 1024:
        # v5e / v6e: 128 MiB physical VMEM -> big tiles keep ~85% of HBM roofline.
        return 64 * 1024 * 1024, 96 * 1024 * 1024
    # v7x (64 MiB physical) or unknown: leave the compiler headroom.
    return 20 * 1024 * 1024, 32 * 1024 * 1024


def _pick_tile_n(n, c, in_bytes_per_elem, budget_bytes):
    """Largest batch tile (multiple of 8, <=2048) fitting the VMEM budget.

    Accounts for 128-lane padding of VMEM blocks and the in-kernel f32 copies.
    """
    c_pad = _round_up(max(c, 1), 128)
    bytes_per_row = (
        2 * c_pad * in_bytes_per_elem   # double-buffered logits block
        + 2 * 128 * 4                   # double-buffered (tile_n,1) int32 targets (lane-padded)
        + 5 * c_pad * 4                 # f32 cast copy + C-wide f32 temporaries
    )
    tile = budget_bytes // max(bytes_per_row, 1)
    tile = min(tile, 2048, _round_up(max(n, 1), 8))
    return int(max(8, (tile // 8) * 8))


def _focal_loss_kernel(x_ref, t_ref, out_ref, *, gamma, alpha, n_valid, tile_n):
    i = pl.program_id(0)

    x = x_ref[...].astype(jnp.float32)             # (TN, C) logits tile
    t = t_ref[...]                                  # (TN, 1) int32 targets

    # log_softmax pieces over the class (lane) axis.
    m = jnp.max(x, axis=-1, keepdims=True)
    shifted = x - m
    lse = jnp.log(jnp.sum(jnp.exp(shifted), axis=-1, keepdims=True))

    # Only the target column of log_probs survives -one_hot*log_probs:
    # gather it with a single masked reduce instead of full probs/one_hot.
    col = lax.broadcasted_iota(jnp.int32, x.shape, 1)
    shifted_t = jnp.sum(jnp.where(col == t, shifted, 0.0), axis=-1, keepdims=True)
    log_p_t = shifted_t - lse                       # (TN, 1)
    p_t = jnp.exp(log_p_t)                          # (TN, 1)

    base = 1.0 - p_t
    g = float(gamma)
    if g.is_integer() and g >= 0:
        gi = int(g)
        if gi == 0:
            w = jnp.ones_like(base)
        else:
            w = base
            for _ in range(gi - 1):
                w = w * base                        # VPU multiplies, no EUP pow
    else:
        w = base ** jnp.float32(gamma)

    if alpha is not None:
        # one_hot == 1 at the target column, so this collapses to `w`
        # (kept only for exact parity with the reference forward).
        w = jnp.float32(alpha) * w + jnp.float32(1.0 - alpha) * w

    contrib = -w * log_p_t                          # (TN, 1) per-row focal loss

    # Select-style mask (not a multiply) so undefined rows of a ragged last
    # block can never leak NaN/Inf into the sum.
    row = lax.broadcasted_iota(jnp.int32, contrib.shape, 0) + i * tile_n
    contrib = jnp.where(row < n_valid, contrib, 0.0)

    tile_sum = jnp.sum(contrib)

    # Per-tile partial: fill this step's private (1, 8, 128) output block with
    # the scalar; wrapper picks [:, 0, 0] and tree-sums.  No cross-step carry
    # -> the grid axis is "parallel" (v7x megacore) and there is no serial
    # accumulation chain.
    out_ref[...] = jnp.full(out_ref.shape, tile_sum, dtype=jnp.float32)


def focal_loss(inputs, targets, gamma=2.0, alpha=None, *, tile_n=None):
    """inputs: [N, C] float logits; targets: [N] int class indices.

    Returns scalar focal loss (sum reduction), matching the PyTorch module.
    """
    N, C = inputs.shape
    budget_bytes, vmem_limit_bytes = _vmem_sizes()
    if tile_n is None:
        tile_n = _pick_tile_n(N, C, jnp.dtype(inputs.dtype).itemsize, budget_bytes)
    tile_n = max(8, (int(tile_n) // 8) * 8)
    num_tiles = pl.cdiv(N, tile_n)

    t = targets.astype(jnp.int32).reshape(N, 1)

    kernel = functools.partial(
        _focal_loss_kernel,
        gamma=float(gamma),
        alpha=None if alpha is None else float(alpha),
        n_valid=N,
        tile_n=tile_n,
    )

    partials = pl.pallas_call(
        kernel,
        out_shape=jax.ShapeDtypeStruct((num_tiles, 8, 128), jnp.float32),
        grid_spec=pltpu.PrefetchScalarGridSpec(
            num_scalar_prefetch=0,
            grid=(num_tiles,),
            in_specs=[
                pl.BlockSpec((tile_n, C), lambda i: (i, 0)),
                pl.BlockSpec((tile_n, 1), lambda i: (i, 0)),
            ],
            out_specs=pl.BlockSpec((1, 8, 128), lambda i: (i, 0, 0)),
        ),
        compiler_params=pltpu.CompilerParams(
            dimension_semantics=("parallel",),
            vmem_limit_bytes=vmem_limit_bytes,
        ),
    )(inputs, t)

    return jnp.sum(partials[:, 0, 0])


def focal_loss_ref(inputs, targets, gamma=2.0, alpha=None):
    """Plain-JAX reference mirroring the PyTorch forward."""
    log_probs = jax.nn.log_softmax(inputs.astype(jnp.float32), axis=-1)
    probs = jnp.exp(log_probs)
    one_hot = jax.nn.one_hot(targets, probs.shape[-1], dtype=jnp.float32)
    loss = -one_hot * log_probs
    weights = (1.0 - probs) ** gamma
    if alpha is not None:
        weights = alpha * one_hot * weights + (1.0 - alpha) * weights
    return jnp.sum(weights * loss)


if __name__ == "__main__":
    key = jax.random.PRNGKey(0)
    k1, k2, k3, k4 = jax.random.split(key, 4)

    # Default module config: gamma=2.0, alpha=None.
    N, C = 16, 32
    logits = jax.random.normal(k1, (N, C), dtype=jnp.float32)
    targets = jax.random.randint(k2, (N,), 0, C, dtype=jnp.int32)

    out = jax.block_until_ready(focal_loss(logits, targets, gamma=2.0, alpha=None))
    ref = focal_loss_ref(logits, targets, gamma=2.0, alpha=None)
    assert jnp.allclose(out, ref, rtol=1e-5, atol=1e-5), (out, ref)

    # Exercise the alpha branch (exact no-op at the target column, kept for parity).
    out_a = jax.block_until_ready(focal_loss(logits, targets, gamma=2.0, alpha=0.25))
    ref_a = focal_loss_ref(logits, targets, gamma=2.0, alpha=0.25)
    assert jnp.allclose(out_a, ref_a, rtol=1e-5, atol=1e-5), (out_a, ref_a)

    # Ragged last block + multiple parallel tiles (no wrapper padding anymore).
    N2 = 13
    logits2 = jax.random.normal(k3, (N2, C), dtype=jnp.float32)
    targets2 = jax.random.randint(k4, (N2,), 0, C, dtype=jnp.int32)
    out_t = jax.block_until_ready(
        focal_loss(logits2, targets2, gamma=2.0, alpha=None, tile_n=8))
    ref_t = focal_loss_ref(logits2, targets2, gamma=2.0, alpha=None)
    assert jnp.allclose(out_t, ref_t, rtol=1e-5, atol=1e-5), (out_t, ref_t)

    # bf16 logits pass-through (halves HBM traffic; math stays f32 in-kernel).
    logits_bf16 = logits.astype(jnp.bfloat16)
    out_b = jax.block_until_ready(focal_loss(logits_bf16, targets, gamma=2.0))
    ref_b = focal_loss_ref(logits_bf16, targets, gamma=2.0)
    assert jnp.allclose(out_b, ref_b, rtol=1e-5, atol=1e-4), (out_b, ref_b)

    print("KERNEL_OK")
</pallas_src>

<mosaic_0001>
module attributes {stable_mosaic.version = 11 : i64} {
  func.func @_focal_loss_kernel(%arg0: i32, %arg1: memref<16x32xf32, #tpu.memory_space<vmem>>, %arg2: memref<16x1xi32, #tpu.memory_space<vmem>>, %arg3: memref<1x8x128xf32, #tpu.memory_space<vmem>>) attributes {dimension_semantics = [#tpu.dimension_semantics<parallel>], iteration_bounds = array<i64: 1>, scalar_prefetch = 0 : i64, scratch_operands = 0 : i64, tpu.core_type = #tpu.core_type<tc>, window_params = [{transform_indices = @transform_0, window_bounds = array<i64: 16, 32>}, {transform_indices = @transform_1, window_bounds = array<i64: 16, 1>}, {transform_indices = @transform_2, window_bounds = array<i64: 1, 8, 128>}]} {
    %c0 = arith.constant 0 : index
    %c0_0 = arith.constant 0 : index
    %0 = vector.load %arg1[%c0, %c0_0] : memref<16x32xf32, #tpu.memory_space<vmem>>, vector<16x32xf32>
    %c0_1 = arith.constant 0 : index
    %c0_2 = arith.constant 0 : index
    %1 = vector.load %arg2[%c0_1, %c0_2] : memref<16x1xi32, #tpu.memory_space<vmem>>, vector<16x1xi32>
    %cst = arith.constant dense<0xFF800000> : vector<16xf32>
    %2 = vector.multi_reduction <maximumf>, %0, %cst [1] : vector<16x32xf32> to vector<16xf32>
    %3 = vector.shape_cast %2 : vector<16xf32> to vector<16x1xf32>
    %4 = vector.broadcast %3 : vector<16x1xf32> to vector<16x32xf32>
    %5 = arith.subf %0, %4 : vector<16x32xf32>
    %6 = math.exp %5 : vector<16x32xf32>
    %cst_3 = arith.constant dense<0.000000e+00> : vector<16xf32>
    %7 = vector.multi_reduction <add>, %6, %cst_3 [1] : vector<16x32xf32> to vector<16xf32>
    %8 = vector.shape_cast %7 : vector<16xf32> to vector<16x1xf32>
    %9 = math.log %8 : vector<16x1xf32>
    %10 = tpu.iota {dimensions = array<i32: 1>} : vector<16x32xi32>
    %11 = vector.broadcast %1 : vector<16x1xi32> to vector<16x32xi32>
    %12 = arith.cmpi eq, %10, %11 : vector<16x32xi32>
    %cst_4 = arith.constant 0.000000e+00 : f32
    %13 = vector.broadcast %cst_4 : f32 to vector<16x32xf32>
    %14 = arith.select %12, %5, %13 : vector<16x32xi1>, vector<16x32xf32>
    %cst_5 = arith.constant dense<0.000000e+00> : vector<16xf32>
    %15 = vector.multi_reduction <add>, %14, %cst_5 [1] : vector<16x32xf32> to vector<16xf32>
    %16 = vector.shape_cast %15 : vector<16xf32> to vector<16x1xf32>
    %17 = arith.subf %16, %9 : vector<16x1xf32>
    %18 = math.exp %17 : vector<16x1xf32>
    %cst_6 = arith.constant 1.000000e+00 : f32
    %19 = vector.broadcast %cst_6 : f32 to vector<16x1xf32>
    %20 = arith.subf %19, %18 : vector<16x1xf32>
    %21 = arith.mulf %20, %20 : vector<16x1xf32>
    %cst_7 = arith.constant 0.000000e+00 : f32
    %22 = vector.broadcast %cst_7 : f32 to vector<16x1xf32>
    %23 = arith.subf %22, %21 : vector<16x1xf32>
    %24 = arith.mulf %23, %17 : vector<16x1xf32>
    %25 = tpu.iota {dimensions = array<i32: 0>} : vector<16x1xi32>
    %c16_i32 = arith.constant 16 : i32
    %26 = arith.muli %arg0, %c16_i32 : i32
    %27 = vector.broadcast %26 : i32 to vector<16x1xi32>
    %28 = arith.addi %25, %27 : vector<16x1xi32>
    %c16_i32_8 = arith.constant 16 : i32
    %29 = vector.broadcast %c16_i32_8 : i32 to vector<16x1xi32>
    %30 = arith.cmpi slt, %28, %29 : vector<16x1xi32>
    %cst_9 = arith.constant 0.000000e+00 : f32
    %31 = vector.broadcast %cst_9 : f32 to vector<16x1xf32>
    %32 = arith.select %30, %24, %31 : vector<16x1xi1>, vector<16x1xf32>
    %33 = vector.shape_cast %32 : vector<16x1xf32> to vector<1x16x1xf32>
    %cst_10 = arith.constant dense<0.000000e+00> : vector<1xf32>
    %34 = vector.multi_reduction <add>, %33, %cst_10 [1, 2] : vector<1x16x1xf32> to vector<1xf32>
    %35 = vector.shape_cast %34 : vector<1xf32> to vector<1x1x1xf32>
    %36 = vector.extract %35[0, 0, 0] : f32 from vector<1x1x1xf32>
    %37 = vector.broadcast %36 : f32 to vector<1x8x128xf32>
    %c0_11 = arith.constant 0 : index
    %c0_12 = arith.constant 0 : index
    %c0_13 = arith.constant 0 : index
    %38 = vector.load %arg3[%c0_11, %c0_12, %c0_13] : memref<1x8x128xf32, #tpu.memory_space<vmem>>, vector<1x8x128xf32>
    tpu.vector_store %arg3[%c0_11, %c0_12, %c0_13], %37 {strides = array<i32>} : memref<1x8x128xf32, #tpu.memory_space<vmem>>, vector<1x8x128xf32>,
    return
  }
  func.func @transform_0(%arg0: i32) -> (i32, i32) {
    %c0_i32 = arith.constant 0 : i32
    %c0_i32_0 = arith.constant 0 : i32
    return %arg0, %c0_i32 : i32, i32
  }
  func.func @transform_1(%arg0: i32) -> (i32, i32) {
    %c0_i32 = arith.constant 0 : i32
    %c0_i32_0 = arith.constant 0 : i32
    return %arg0, %c0_i32 : i32, i32
  }
  func.func @transform_2(%arg0: i32) -> (i32, i32, i32) {
    %c0_i32 = arith.constant 0 : i32
    %c0_i32_0 = arith.constant 0 : i32
    %c0_i32_1 = arith.constant 0 : i32
    return %arg0, %c0_i32, %c0_i32_0 : i32, i32, i32
  }
}

</mosaic_0001>

<llo_original>
// kernel: tpu_custom_call.1
$region0: #{tpu_custom_call.1}
  #allocation0 [shape = 'u32[]', space=smem, size = 0x4, offset = 0x4, fixed_abs, tag = 'smem constant byte address 0x4 - core index']
  #allocation1 [shape = 'u32[144,128]{1,0:T(1,128)}', space=vmem, size = 0x12000, scoped, tag = 'internal scratch']
  %s0 = inlined_call_operand.vmem [shape: f32[16,32], index: 0, kind: input, shape index: {}]
  %s1 = inlined_call_operand.vmem [shape: s32[16,1], index: 1, kind: input, shape index: {}]
  %s2 = inlined_call_operand.hbm [shape: f32[1,8,128], index: 2, kind: output, shape index: {}]
  %s3 = sld [smem:[#allocation0]]
  $region18: #{tpu_custom_call.1} parent=0
    _
  %s5 = ssub.s32 1, %s3
  %s6 = scalar_select 0, %s5, %s3
  $region1: #{tpu_custom_call.1} parent=0
    #allocation2 [shape = 'u8[4096]{0}', space=vmem, size = 0x1000, scoped, tag = 'output window, operand 0, single buffered']
    #allocation3 [shape = 's32[1]{0}', space=sflag, size = 0x4, scoped, tag = 'scoped memory for tpu_custom_call.1']
    %7 = vsyncpa [#allocation3], 0
    // Predicated region
    $region2: #{tpu_custom_call.1} parent=1 // pred_check
      _
    $region3: #{tpu_custom_call.1} parent=1 // pred_check_branch
      %9 = sbr.rel (0) target = $region5
    $region4: #{tpu_custom_call.1} parent=1 // pred_region
      _
    $region5: #{tpu_custom_call.1} parent=1 // pred_fallthru
      _
    // Predicated region
    $region6: #{tpu_custom_call.1} parent=1 // pred_check
      _
    $region7: #{tpu_custom_call.1} parent=1 // pred_check_branch
      %11 = sbr.rel (0) target = $region9
    $region8: #{tpu_custom_call.1} parent=1 // pred_region
      _
    $region9: #{tpu_custom_call.1} parent=1 // pred_fallthru
      _
    %v12 = vld [vmem:[%s0] sm:$0xff]
    %v13 = vld [vmem:[%s0 + $0x8] sm:$0xff]
    %v14 = vld [vmem:[%s1] sm:$0xff]
    %v15 = vld [vmem:[%s1 + $0x8] sm:$0xff]
    %vm16 = vcmask 261120
    %v17 = vsel %vm16, %v12, -inf
    %18 = vmax.xlane.f32.xlu0 %v17
    %v19 = vpop.xlane.xlu0 %18
    %v20 = vsel %vm16, %v13, -inf
    %21 = vmax.xlane.f32.xlu0 %v20
    %v22 = vpop.xlane.xlu0 %21
    %v23 = vsub.f32 %v12, %v19
    %v24 = vsub.f32 %v13, %v22
    %v25 = vmul.f32 %v23, 1.442695
    %v26 = vpow.pop %v25
    %v27 = vmul.f32 %v24, 1.442695
    %v28 = vpow.pop %v27
    %v29 = vsel %vm16, %v26, 0.0
    %30 = vadd.xlane.f32.xlu0 %v29
    %v31 = vpop.xlane.xlu0 %30
    %v32 = vsel %vm16, %v28, 0.0
    %33 = vadd.xlane.f32.xlu0 %v32
    %v34 = vpop.xlane.xlu0 %33
    %v35 = vlog2.pop %v31
    %v36 = vmul.f32 %v35, 0.6931472
    %v37 = vlog2.pop %v34
    %v38 = vmul.f32 %v37, 0.6931472
    %v39 = vlaneseq
    %v40 = vand.u32 %v39, 127
    %41 = vset.pattern.permute.xlu0 0
    %42 = vperm.xlu0 %41, %v14
    %v43 = vpop.permute.xlu0 %42
    %44 = vset.pattern.permute.xlu0 0
    %45 = vperm.xlu0 %44, %v15
    %v46 = vpop.permute.xlu0 %45
    %vm47 = vcmp.eq.s32.totalorder %v40, %v43
    %vm48 = vcmp.eq.s32.totalorder %v40, %v46
    %v49 = vsel %vm47, %v23, 0.0
    %v50 = vsel %vm48, %v24, 0.0
    %v51 = vsel %vm16, %v49, 0.0
    %52 = vadd.xlane.f32.xlu0 %v51
    %v53 = vpop.xlane.xlu0 %52
    %v54 = vsel %vm16, %v50, 0.0
    %55 = vadd.xlane.f32.xlu0 %v54
    %v56 = vpop.xlane.xlu0 %55
    %v57 = vsub.f32 %v53, %v36
    %v58 = vsub.f32 %v56, %v38
    %v59 = vmul.f32 %v57, 1.442695
    %v60 = vpow.pop %v59
    %v61 = vmul.f32 %v58, 1.442695
    %v62 = vpow.pop %v61
    %v63 = vsub.f32 1.0, %v60
    %v64 = vsub.f32 1.0, %v62
    %v65 = vmul.f32 %v63, %v63
    %v66 = vmul.f32 %v64, %v64
    %v67 = vsub.f32 0.0, %v65
    %v68 = vsub.f32 0.0, %v66
    %v69 = vmul.f32 %v67, %v57
    %v70 = vmul.f32 %v68, %v58
    %v71 = vlaneseq
    %v72 = vshrl.u32 %v71, 7
    %v73 = vadd.s32 %v72, 8
    %s74 = smul.u32 0, 16
    %v75 = vstv %s74
    %v76 = vadd.s32 %v72, %v75
    %v77 = vadd.s32 %v73, %v75
    %vm78 = vcmp.lt.s32.totalorder %v76, 16
    %vm79 = vcmp.lt.s32.totalorder %v77, 16
    %v80 = vsel %vm78, %v69, 0.0
    %v81 = vsel %vm79, %v70, 0.0
    %vm82 = vcmask 7168
    %v83 = vsel %vm82, %v80, 0.0
    %v84 = vsel %vm82, %v81, 0.0
    %v85 = vadd.f32 %v83, %v84
    %86 = vadd.xlane.f32.xlu0 %v85
    %v87 = vpop.xlane.xlu0 %86
    %v88 = vrot.slane %v87, 4
    %v89 = vadd.f32 %v87, %v88
    %v90 = vrot.slane %v89, 2
    %v91 = vadd.f32 %v89, %v90
    %v92 = vrot.slane %v91, 1
    %v93 = vadd.f32 %v91, %v92
    %s94 = vtos %v93
    %v95 = vstv %s94
    %96 = vst [vmem:[#allocation2] sm:$0xff] %v95
    // Predicated region
    $region10: #{tpu_custom_call.1} parent=1 // pred_check
      _
    $region11: #{tpu_custom_call.1} parent=1 // pred_check_branch
      %98 = sbr.rel (0) target = $region13
    $region12: #{tpu_custom_call.1} parent=1 // pred_region
      %s100 = ssub.s32 128, 128
      %101 = vsyncadd [#allocation3], %s100
      %s103 = sshll.u32 [#allocation2], 4
      %s104 = int_to_ptr.vmem [resolvable:$true] %s103
      %106 = dma.vmem_to_hbm [thread:$0]  %s104, 128, %s2, [#allocation3]
    $region13: #{tpu_custom_call.1} parent=1 // pred_fallthru
      _
    // Predicated region
    $region14: #{tpu_custom_call.1} parent=1 // pred_check
      _
    $region15: #{tpu_custom_call.1} parent=1 // pred_check_branch
      %108 = sbr.rel (0) target = $region17
    $region16: #{tpu_custom_call.1} parent=1 // pred_region
      %109 = dma.done [#allocation3], 128
    $region17: #{tpu_custom_call.1} parent=1 // pred_fallthru
      _
    %110 = vsyncpa [#allocation3], 1

</llo_original>
